<compile_context>
chip_gen: v7x
topology: tpu7x:2x2x1
jax: 0.10.0
libtpu: 0.0.40
codegen_flags: <defaults>
</compile_context>

<pallas_src>
import jax
import jax.numpy as jnp
from jax.experimental import pallas as pl
from jax.experimental.pallas import tpu as pltpu

IN_FEAT = 8   # fc1 input features
H1 = 64       # fc1 output
H2 = 128      # fc2 output


def _round_up(n, m):
    return ((n + m - 1) // m) * m


def _choose_batch_tiling(B, block_b):
    lane = 128
    b_min = _round_up(B, lane)
    tb = min(_round_up(max(block_b, lane), lane), b_min)   # tb multiple of 128
    b_pad = _round_up(B, tb)
    # Guarantee >= 2 grid steps when possible so "parallel" can use both v7x TCs.
    if b_pad // tb == 1 and tb > lane:
        tb = _round_up(tb // 2, lane)
        b_pad = _round_up(B, tb)
    # In-kernel sub-chunks (MXU/EUP overlap); each sub-chunk stays lane-aligned.
    nsub = 1
    for cand in (4, 2):
        if tb % (cand * lane) == 0:
            nsub = cand
            break
    return tb, b_pad, nsub, tb // nsub


def _make_qnetwork_kernel(nsub, sub):
    def kernel(xT_ref, w1_ref, b1_ref, w2_ref, b2_ref, w3_ref, b3_ref, o_ref):
        # Weights/biases are tiny and VMEM-resident; load once per grid step.
        w1 = w1_ref[...]
        b1 = b1_ref[...]
        w2 = w2_ref[...]
        b2 = b2_ref[...]
        w3 = w3_ref[...]
        b3 = b3_ref[...]
        # Static sub-chunks along the lane (batch) axis: the LLO scheduler can
        # overlap MXU matmuls of sub-chunk s with the EUP tanh of sub-chunk s+1.
        for s in range(nsub):
            lo, hi = s * sub, (s + 1) * sub
            xT = xT_ref[:, lo:hi]                                        # (8, sub) bf16
            h1 = jnp.tanh(
                jnp.dot(w1, xT, preferred_element_type=jnp.float32) + b1
            ).astype(jnp.bfloat16)                                       # (64, sub)
            h2 = jnp.tanh(
                jnp.dot(w2, h1, preferred_element_type=jnp.float32) + b2
            ).astype(jnp.bfloat16)                                       # (128, sub)
            out = jnp.dot(w3, h2, preferred_element_type=jnp.float32) + b3
            o_ref[:, lo:hi] = out.astype(o_ref.dtype)                    # (n_out_pad, sub)
    return kernel


def init_params(key, n_actions=1):
    # torch.nn.Linear default init: U(-1/sqrt(fan_in), +1/sqrt(fan_in)) for W and b,
    # with W stored as (out_features, in_features).
    sizes = [(IN_FEAT, H1), (H1, H2), (H2, n_actions + 1)]
    params = []
    for fan_in, fan_out in sizes:
        key, kw, kb = jax.random.split(key, 3)
        bound = 1.0 / jnp.sqrt(fan_in)
        w = jax.random.uniform(kw, (fan_out, fan_in), jnp.float32, -bound, bound)
        b = jax.random.uniform(kb, (fan_out,), jnp.float32, -bound, bound)
        params.extend([w, b])
    return tuple(params)


def prepare_params(params):
    """Cast weights to bf16, reshape biases to column vectors, and pad the head's
    output rows up to the 8-sublane granule. Done once, not in-kernel."""
    w1, b1, w2, b2, w3, b3 = params
    n_out = w3.shape[0]
    n_out_pad = _round_up(n_out, 8)
    w1k = w1.astype(jnp.bfloat16)                                   # (64, 8)
    b1k = b1.reshape(H1, 1).astype(jnp.float32)
    w2k = w2.astype(jnp.bfloat16)                                   # (128, 64)
    b2k = b2.reshape(H2, 1).astype(jnp.float32)
    w3k = jnp.zeros((n_out_pad, H2), jnp.bfloat16).at[:n_out, :].set(w3.astype(jnp.bfloat16))
    b3k = jnp.zeros((n_out_pad, 1), jnp.float32).at[:n_out, 0].set(b3)
    return (w1k, b1k, w2k, b2k, w3k, b3k), n_out


def qnetwork_forward(x, kernel_params, n_out, *, block_b=2048):
    """x: (B, 8) f32. kernel_params from prepare_params(). Returns (B, n_out) f32."""
    w1, b1, w2, b2, w3, b3 = kernel_params
    n_out_pad = w3.shape[0]
    B = x.shape[0]
    tb, b_pad, nsub, sub = _choose_batch_tiling(B, block_b)

    # Lane-dense (features, batch) input slab; batch padded to a whole number of tiles.
    xT = x.astype(jnp.bfloat16).T
    if b_pad != B:
        xT = jnp.pad(xT, ((0, 0), (0, b_pad - B)))
    grid = (b_pad // tb,)

    # Weights/biases stay VMEM-resident (constant block index across the grid).
    const = lambda arr: pl.BlockSpec(arr.shape, lambda i: (0, 0))

    flops = 2 * b_pad * (IN_FEAT * H1 + H1 * H2 + H2 * n_out_pad)
    transcendentals = b_pad * (H1 + H2)
    bytes_accessed = int(
        xT.size * xT.dtype.itemsize
        + sum(int(p.size) * p.dtype.itemsize for p in kernel_params)
        + b_pad * n_out_pad * 4
    )

    out = pl.pallas_call(
        _make_qnetwork_kernel(nsub, sub),
        out_shape=jax.ShapeDtypeStruct((n_out_pad, b_pad), jnp.float32),
        grid_spec=pltpu.PrefetchScalarGridSpec(
            num_scalar_prefetch=0,
            grid=grid,
            in_specs=[
                pl.BlockSpec((IN_FEAT, tb), lambda i: (0, i)),
                const(w1), const(b1), const(w2), const(b2), const(w3), const(b3),
            ],
            out_specs=pl.BlockSpec((n_out_pad, tb), lambda i: (0, i)),
        ),
        compiler_params=pltpu.CompilerParams(
            dimension_semantics=("parallel",),
        ),
        cost_estimate=pl.CostEstimate(
            flops=flops,
            transcendentals=transcendentals,
            bytes_accessed=bytes_accessed,
        ),
    )(xT, w1, b1, w2, b2, w3, b3)

    # (n_out_pad, b_pad) -> (B, n_out): tiny slice/transpose over only 8 rows.
    return out[:n_out, :B].T


def reference_forward(x, params):
    w1, b1, w2, b2, w3, b3 = params
    h1 = jnp.tanh(x @ w1.T + b1)
    h2 = jnp.tanh(h1 @ w2.T + b2)
    return h2 @ w3.T + b3


if __name__ == "__main__":
    key = jax.random.PRNGKey(0)
    key, kx = jax.random.split(key)

    n_actions = 1
    batch = 260  # exercises batch padding, a 2-step grid, and in-kernel sub-chunking
    x = jax.random.normal(kx, (batch, IN_FEAT), jnp.float32)

    params = init_params(key, n_actions=n_actions)
    kernel_params, n_out = prepare_params(params)

    out = qnetwork_forward(x, kernel_params, n_out)
    out = jax.block_until_ready(out)

    ref = reference_forward(x, params)
    assert out.shape == (batch, n_actions + 1), out.shape
    # bf16 operands / f32 accumulation vs. a pure-f32 reference: tanh-bounded
    # activations keep the absolute error well below 1e-2 at this scale.
    err = float(jnp.max(jnp.abs(out - ref)))
    assert err < 3e-2, err

    print("KERNEL_OK")
</pallas_src>

<mosaic_0001>
module attributes {stable_mosaic.version = 11 : i64} {
  func.func @kernel(%arg0: i32, %arg1: memref<8x256xbf16, #tpu.memory_space<vmem>>, %arg2: memref<64x8xbf16, #tpu.memory_space<vmem>>, %arg3: memref<64x1xf32, #tpu.memory_space<vmem>>, %arg4: memref<128x64xbf16, #tpu.memory_space<vmem>>, %arg5: memref<128x1xf32, #tpu.memory_space<vmem>>, %arg6: memref<8x128xbf16, #tpu.memory_space<vmem>>, %arg7: memref<8x1xf32, #tpu.memory_space<vmem>>, %arg8: memref<8x256xf32, #tpu.memory_space<vmem>>) attributes {dimension_semantics = [#tpu.dimension_semantics<parallel>], iteration_bounds = array<i64: 2>, scalar_prefetch = 0 : i64, scratch_operands = 0 : i64, tpu.core_type = #tpu.core_type<tc>, window_params = [{transform_indices = @transform_0, window_bounds = array<i64: 8, 256>}, {pipeline_mode = #tpu.pipeline_mode<synchronous>, transform_indices = @transform_1, window_bounds = array<i64: 64, 8>}, {pipeline_mode = #tpu.pipeline_mode<synchronous>, transform_indices = @transform_2, window_bounds = array<i64: 64, 1>}, {pipeline_mode = #tpu.pipeline_mode<synchronous>, transform_indices = @transform_3, window_bounds = array<i64: 128, 64>}, {pipeline_mode = #tpu.pipeline_mode<synchronous>, transform_indices = @transform_4, window_bounds = array<i64: 128, 1>}, {pipeline_mode = #tpu.pipeline_mode<synchronous>, transform_indices = @transform_5, window_bounds = array<i64: 8, 128>}, {pipeline_mode = #tpu.pipeline_mode<synchronous>, transform_indices = @transform_6, window_bounds = array<i64: 8, 1>}, {transform_indices = @transform_7, window_bounds = array<i64: 8, 256>}]} {
    %c0 = arith.constant 0 : index
    %c0_0 = arith.constant 0 : index
    %0 = vector.load %arg2[%c0, %c0_0] : memref<64x8xbf16, #tpu.memory_space<vmem>>, vector<64x8xbf16>
    %c0_1 = arith.constant 0 : index
    %c0_2 = arith.constant 0 : index
    %1 = vector.load %arg3[%c0_1, %c0_2] : memref<64x1xf32, #tpu.memory_space<vmem>>, vector<64x1xf32>
    %c0_3 = arith.constant 0 : index
    %c0_4 = arith.constant 0 : index
    %2 = vector.load %arg4[%c0_3, %c0_4] : memref<128x64xbf16, #tpu.memory_space<vmem>>, vector<128x64xbf16>
    %c0_5 = arith.constant 0 : index
    %c0_6 = arith.constant 0 : index
    %3 = vector.load %arg5[%c0_5, %c0_6] : memref<128x1xf32, #tpu.memory_space<vmem>>, vector<128x1xf32>
    %c0_7 = arith.constant 0 : index
    %c0_8 = arith.constant 0 : index
    %4 = vector.load %arg6[%c0_7, %c0_8] : memref<8x128xbf16, #tpu.memory_space<vmem>>, vector<8x128xbf16>
    %c0_9 = arith.constant 0 : index
    %c0_10 = arith.constant 0 : index
    %5 = vector.load %arg7[%c0_9, %c0_10] : memref<8x1xf32, #tpu.memory_space<vmem>>, vector<8x1xf32>
    %c0_11 = arith.constant 0 : index
    %c0_12 = arith.constant 0 : index
    %6 = vector.load %arg1[%c0_11, %c0_12] : memref<8x256xbf16, #tpu.memory_space<vmem>>, vector<8x128xbf16>
    %cst = arith.constant dense<0.000000e+00> : vector<64x128xf32>
    %7 = tpu.matmul %0, %6, %cst {dimension_numbers = #tpu.dot_dimension_numbers<[1], [0], [0], [1], [0, 0, 1, 1], [], []>} : vector<64x8xbf16>, vector<8x128xbf16>, vector<64x128xf32> -> vector<64x128xf32>
    %8 = vector.broadcast %1 : vector<64x1xf32> to vector<64x128xf32>
    %9 = arith.addf %7, %8 : vector<64x128xf32>
    %10 = math.tanh %9 : vector<64x128xf32>
    %11 = arith.truncf %10 : vector<64x128xf32> to vector<64x128xbf16>
    %cst_13 = arith.constant dense<0.000000e+00> : vector<128x128xf32>
    %12 = tpu.matmul %2, %11, %cst_13 {dimension_numbers = #tpu.dot_dimension_numbers<[1], [0], [0], [1], [0, 0, 1, 1], [], []>} : vector<128x64xbf16>, vector<64x128xbf16>, vector<128x128xf32> -> vector<128x128xf32>
    %13 = vector.broadcast %3 : vector<128x1xf32> to vector<128x128xf32>
    %14 = arith.addf %12, %13 : vector<128x128xf32>
    %15 = math.tanh %14 : vector<128x128xf32>
    %16 = arith.truncf %15 : vector<128x128xf32> to vector<128x128xbf16>
    %cst_14 = arith.constant dense<0.000000e+00> : vector<8x128xf32>
    %17 = tpu.matmul %4, %16, %cst_14 {dimension_numbers = #tpu.dot_dimension_numbers<[1], [0], [0], [1], [0, 0, 1, 1], [], []>} : vector<8x128xbf16>, vector<128x128xbf16>, vector<8x128xf32> -> vector<8x128xf32>
    %18 = vector.broadcast %5 : vector<8x1xf32> to vector<8x128xf32>
    %19 = arith.addf %17, %18 : vector<8x128xf32>
    %c0_15 = arith.constant 0 : index
    %c0_16 = arith.constant 0 : index
    %20 = vector.load %arg8[%c0_15, %c0_16] : memref<8x256xf32, #tpu.memory_space<vmem>>, vector<8x128xf32>
    tpu.vector_store %arg8[%c0_15, %c0_16], %19 {strides = array<i32>} : memref<8x256xf32, #tpu.memory_space<vmem>>, vector<8x128xf32>,
    %c0_17 = arith.constant 0 : index
    %c128 = arith.constant 128 : index
    %21 = vector.load %arg1[%c0_17, %c128] : memref<8x256xbf16, #tpu.memory_space<vmem>>, vector<8x128xbf16>
    %cst_18 = arith.constant dense<0.000000e+00> : vector<64x128xf32>
    %22 = tpu.matmul %0, %21, %cst_18 {dimension_numbers = #tpu.dot_dimension_numbers<[1], [0], [0], [1], [0, 0, 1, 1], [], []>} : vector<64x8xbf16>, vector<8x128xbf16>, vector<64x128xf32> -> vector<64x128xf32>
    %23 = vector.broadcast %1 : vector<64x1xf32> to vector<64x128xf32>
    %24 = arith.addf %22, %23 : vector<64x128xf32>
    %25 = math.tanh %24 : vector<64x128xf32>
    %26 = arith.truncf %25 : vector<64x128xf32> to vector<64x128xbf16>
    %cst_19 = arith.constant dense<0.000000e+00> : vector<128x128xf32>
    %27 = tpu.matmul %2, %26, %cst_19 {dimension_numbers = #tpu.dot_dimension_numbers<[1], [0], [0], [1], [0, 0, 1, 1], [], []>} : vector<128x64xbf16>, vector<64x128xbf16>, vector<128x128xf32> -> vector<128x128xf32>
    %28 = vector.broadcast %3 : vector<128x1xf32> to vector<128x128xf32>
    %29 = arith.addf %27, %28 : vector<128x128xf32>
    %30 = math.tanh %29 : vector<128x128xf32>
    %31 = arith.truncf %30 : vector<128x128xf32> to vector<128x128xbf16>
    %cst_20 = arith.constant dense<0.000000e+00> : vector<8x128xf32>
    %32 = tpu.matmul %4, %31, %cst_20 {dimension_numbers = #tpu.dot_dimension_numbers<[1], [0], [0], [1], [0, 0, 1, 1], [], []>} : vector<8x128xbf16>, vector<128x128xbf16>, vector<8x128xf32> -> vector<8x128xf32>
    %33 = vector.broadcast %5 : vector<8x1xf32> to vector<8x128xf32>
    %34 = arith.addf %32, %33 : vector<8x128xf32>
    %c0_21 = arith.constant 0 : index
    %c128_22 = arith.constant 128 : index
    %35 = vector.load %arg8[%c0_21, %c128_22] : memref<8x256xf32, #tpu.memory_space<vmem>>, vector<8x128xf32>
    tpu.vector_store %arg8[%c0_21, %c128_22], %34 {strides = array<i32>} : memref<8x256xf32, #tpu.memory_space<vmem>>, vector<8x128xf32>,
    return
  }
  func.func @transform_0(%arg0: i32) -> (i32, i32) {
    %c0_i32 = arith.constant 0 : i32
    %c0_i32_0 = arith.constant 0 : i32
    return %c0_i32, %arg0 : i32, i32
  }
  func.func @transform_1(%arg0: i32) -> (i32, i32) {
    %c0_i32 = arith.constant 0 : i32
    %c0_i32_0 = arith.constant 0 : i32
    %c0_i32_1 = arith.constant 0 : i32
    return %c0_i32, %c0_i32_0 : i32, i32
  }
  func.func @transform_2(%arg0: i32) -> (i32, i32) {
    %c0_i32 = arith.constant 0 : i32
    %c0_i32_0 = arith.constant 0 : i32
    %c0_i32_1 = arith.constant 0 : i32
    return %c0_i32, %c0_i32_0 : i32, i32
  }
  func.func @transform_3(%arg0: i32) -> (i32, i32) {
    %c0_i32 = arith.constant 0 : i32
    %c0_i32_0 = arith.constant 0 : i32
    %c0_i32_1 = arith.constant 0 : i32
    return %c0_i32, %c0_i32_0 : i32, i32
  }
  func.func @transform_4(%arg0: i32) -> (i32, i32) {
    %c0_i32 = arith.constant 0 : i32
    %c0_i32_0 = arith.constant 0 : i32
    %c0_i32_1 = arith.constant 0 : i32
    return %c0_i32, %c0_i32_0 : i32, i32
  }
  func.func @transform_5(%arg0: i32) -> (i32, i32) {
    %c0_i32 = arith.constant 0 : i32
    %c0_i32_0 = arith.constant 0 : i32
    %c0_i32_1 = arith.constant 0 : i32
    return %c0_i32, %c0_i32_0 : i32, i32
  }
  func.func @transform_6(%arg0: i32) -> (i32, i32) {
    %c0_i32 = arith.constant 0 : i32
    %c0_i32_0 = arith.constant 0 : i32
    %c0_i32_1 = arith.constant 0 : i32
    return %c0_i32, %c0_i32_0 : i32, i32
  }
  func.func @transform_7(%arg0: i32) -> (i32, i32) {
    %c0_i32 = arith.constant 0 : i32
    %c0_i32_0 = arith.constant 0 : i32
    return %c0_i32, %arg0 : i32, i32
  }
}

</mosaic_0001>

<llo_original>
// kernel: tpu_custom_call.1
$region0: #{tpu_custom_call.1}
  #allocation0 [shape = 'u32[]', space=smem, size = 0x4, offset = 0x4, fixed_abs, tag = 'smem constant byte address 0x4 - core index']
  #allocation1 [shape = 'u32[144,128]{1,0:T(1,128)}', space=vmem, size = 0x12000, scoped, tag = 'internal scratch']
  %s0 = inlined_call_operand.vmem [shape: bf16[8,512], index: 0, kind: input, shape index: {}]
  %s1 = inlined_call_operand.vmem [shape: bf16[64,8], index: 1, kind: input, shape index: {}]
  %s2 = inlined_call_operand.vmem [shape: f32[64,1], index: 2, kind: input, shape index: {}]
  %s3 = inlined_call_operand.vmem [shape: bf16[128,64], index: 3, kind: input, shape index: {}]
  %s4 = inlined_call_operand.vmem [shape: f32[128,1], index: 4, kind: input, shape index: {}]
  %s5 = inlined_call_operand.vmem [shape: bf16[8,128], index: 5, kind: input, shape index: {}]
  %s6 = inlined_call_operand.vmem [shape: f32[8,1], index: 6, kind: input, shape index: {}]
  %s7 = inlined_call_operand.hbm [shape: f32[8,512], index: 7, kind: output, shape index: {}]
  %s8 = sld [smem:[#allocation0]]
  $region61: #{tpu_custom_call.1} parent=0
    _
  %s10 = ssub.s32 1, %s8
  %s11 = scalar_select 0, %s10, %s8
  $region1: #{tpu_custom_call.1} parent=0
    #allocation2 [shape = 'u8[16384]{0}', space=vmem, size = 0x4000, scoped, tag = 'output window, operand 0']
    #allocation3 [shape = 's32[2]{0}', space=sflag, size = 0x8, scoped, tag = 'scoped memory for tpu_custom_call.1']
    %12 = vsyncpa [#allocation3], 0
    %s13 = scalar_lea.sflag [#allocation3], 1
    %14 = vsyncpa %s13, 0
    loop: start=0, step=1, limit=4
    $region2: #{tpu_custom_call.1} parent=1 // loop_pre_header
      _
    $region3: #{tpu_custom_call.1} parent=1 // loop_header
      %s16 = sphi 0, %s20
      %p17 = scmp.ge.s32.totalorder %s16, 4
      %s26 = sphi 0, %s28
      %s29 = sphi 0, %s26
      %s30 = sphi 0, %s29
      %s46 = sphi 0, %s30
      %s50 = sphi 0, %s50
      %s52 = sphi 0, %s50
      %s53 = sphi 0, %s52
      %s67 = sphi 0, %s53
      %s71 = sphi 0, %s71
      %s73 = sphi 0, %s71
      %s74 = sphi 0, %s73
      %s88 = sphi 0, %s74
      %s92 = sphi 0, %s92
      %s94 = sphi 0, %s92
      %s95 = sphi 0, %s94
      %s109 = sphi 0, %s95
      %s113 = sphi 0, %s113
      %s115 = sphi 0, %s113
      %s116 = sphi 0, %s115
      %s130 = sphi 0, %s116
      %s134 = sphi 0, %s134
      %s136 = sphi 0, %s134
      %s137 = sphi 0, %s136
      %s151 = sphi 0, %s137
      %s155 = sphi 0, %s155
      %s157 = sphi 0, %s155
      %s158 = sphi 0, %s157
      %s172 = sphi 0, %s158
      %s178 = sphi 0, %s180
      %s181 = sphi 0, %s178
      %s182 = sphi 0, %s181
      %s198 = sphi 0, %s182
    $region4: #{tpu_custom_call.1} parent=1 // loop_header_branch
      %19 = sbr.rel (%p17) target = $region8
    $region5: #{tpu_custom_call.1} parent=1 // loop_body
      %s21 = ssub.s32 %s16, 1
      %s22 = ssub.s32 %s16, 2
      %s23 = sadd.s32 %s16, 1
      %s24 = ssub.s32 %s16, %s23
      %p25 = scmp.eq.s32.totalorder %s24, 0
      %s27 = sadd.s32 %s26, 1
      %s28 = scalar_select %p25, %s26, %s27
      %p31 = pneg %p25
      %p32 = scmp.eq.s32.totalorder %s16, 1
      %p33 = por %p31, %p32
      %p34 = scmp.ne.s32.totalorder %s26, %s29
      %p35 = scmp.eq.s32.totalorder %s16, 0
      %p36 = por %p34, %p35
      %p37 = scmp.ne.s32.totalorder %s26, %s29
      %p38 = scmp.eq.s32.totalorder %s21, 1
      %p39 = por %p37, %p38
      %p40 = scmp.ne.s32.totalorder %s29, %s30
      %p41 = scmp.eq.s32.totalorder %s21, 0
      %p42 = por %p40, %p41
      %p43 = scmp.ne.s32.totalorder %s29, %s30
      %p44 = scmp.eq.s32.totalorder %s22, 1
      %p45 = por %p43, %p44
      %p47 = scmp.ne.s32.totalorder %s30, %s46
      %p48 = scmp.eq.s32.totalorder %s22, 0
      %p49 = por %p47, %p48
      %s51 = sadd.s32 %s50, 1
      %p54 = scmp.eq.s32.totalorder %s16, 1
      %p55 = scmp.ne.s32.totalorder %s50, %s52
      %p56 = scmp.eq.s32.totalorder %s16, 0
      %p57 = por %p55, %p56
      %p58 = scmp.ne.s32.totalorder %s50, %s52
      %p59 = scmp.eq.s32.totalorder %s21, 1
      %p60 = por %p58, %p59
      %p61 = scmp.ne.s32.totalorder %s52, %s53
      %p62 = scmp.eq.s32.totalorder %s21, 0
      %p63 = por %p61, %p62
      %p64 = scmp.ne.s32.totalorder %s52, %s53
      %p65 = scmp.eq.s32.totalorder %s22, 1
      %p66 = por %p64, %p65
      %p68 = scmp.ne.s32.totalorder %s53, %s67
      %p69 = scmp.eq.s32.totalorder %s22, 0
      %p70 = por %p68, %p69
      %s72 = sadd.s32 %s71, 1
      %p75 = scmp.eq.s32.totalorder %s16, 1
      %p76 = scmp.ne.s32.totalorder %s71, %s73
      %p77 = scmp.eq.s32.totalorder %s16, 0
      %p78 = por %p76, %p77
      %p79 = scmp.ne.s32.totalorder %s71, %s73
      %p80 = scmp.eq.s32.totalorder %s21, 1
      %p81 = por %p79, %p80
      %p82 = scmp.ne.s32.totalorder %s73, %s74
      %p83 = scmp.eq.s32.totalorder %s21, 0
      %p84 = por %p82, %p83
      %p85 = scmp.ne.s32.totalorder %s73, %s74
      %p86 = scmp.eq.s32.totalorder %s22, 1
      %p87 = por %p85, %p86
      %p89 = scmp.ne.s32.totalorder %s74, %s88
      %p90 = scmp.eq.s32.totalorder %s22, 0
      %p91 = por %p89, %p90
      %s93 = sadd.s32 %s92, 1
      %p96 = scmp.eq.s32.totalorder %s16, 1
      %p97 = scmp.ne.s32.totalorder %s92, %s94
      %p98 = scmp.eq.s32.totalorder %s16, 0
      %p99 = por %p97, %p98
      %p100 = scmp.ne.s32.totalorder %s92, %s94
      %p101 = scmp.eq.s32.totalorder %s21, 1
      %p102 = por %p100, %p101
      %p103 = scmp.ne.s32.totalorder %s94, %s95
      %p104 = scmp.eq.s32.totalorder %s21, 0
      %p105 = por %p103, %p104
      %p106 = scmp.ne.s32.totalorder %s94, %s95
      %p107 = scmp.eq.s32.totalorder %s22, 1
      %p108 = por %p106, %p107
      %p110 = scmp.ne.s32.totalorder %s95, %s109
      %p111 = scmp.eq.s32.totalorder %s22, 0
      %p112 = por %p110, %p111
      %s114 = sadd.s32 %s113, 1
      %p117 = scmp.eq.s32.totalorder %s16, 1
      %p118 = scmp.ne.s32.totalorder %s113, %s115
      %p119 = scmp.eq.s32.totalorder %s16, 0
      %p120 = por %p118, %p119
      %p121 = scmp.ne.s32.totalorder %s113, %s115
      %p122 = scmp.eq.s32.totalorder %s21, 1
      %p123 = por %p121, %p122
      %p124 = scmp.ne.s32.totalorder %s115, %s116
      %p125 = scmp.eq.s32.totalorder %s21, 0
      %p126 = por %p124, %p125
      %p127 = scmp.ne.s32.totalorder %s115, %s116
      %p128 = scmp.eq.s32.totalorder %s22, 1
      %p129 = por %p127, %p128
      %p131 = scmp.ne.s32.totalorder %s116, %s130
      %p132 = scmp.eq.s32.totalorder %s22, 0
      %p133 = por %p131, %p132
      %s135 = sadd.s32 %s134, 1
      %p138 = scmp.eq.s32.totalorder %s16, 1
      %p139 = scmp.ne.s32.totalorder %s134, %s136
      %p140 = scmp.eq.s32.totalorder %s16, 0
      %p141 = por %p139, %p140
      %p142 = scmp.ne.s32.totalorder %s134, %s136
      %p143 = scmp.eq.s32.totalorder %s21, 1
      %p144 = por %p142, %p143
      %p145 = scmp.ne.s32.totalorder %s136, %s137
      %p146 = scmp.eq.s32.totalorder %s21, 0
      %p147 = por %p145, %p146
      %p148 = scmp.ne.s32.totalorder %s136, %s137
      %p149 = scmp.eq.s32.totalorder %s22, 1
      %p150 = por %p148, %p149
      %p152 = scmp.ne.s32.totalorder %s137, %s151
      %p153 = scmp.eq.s32.totalorder %s22, 0
      %p154 = por %p152, %p153
      %s156 = sadd.s32 %s155, 1
      %p159 = scmp.eq.s32.totalorder %s16, 1
      %p160 = scmp.ne.s32.totalorder %s155, %s157
      %p161 = scmp.eq.s32.totalorder %s16, 0
      %p162 = por %p160, %p161
      %p163 = scmp.ne.s32.totalorder %s155, %s157
      %p164 = scmp.eq.s32.totalorder %s21, 1
      %p165 = por %p163, %p164
      %p166 = scmp.ne.s32.totalorder %s157, %s158
      %p167 = scmp.eq.s32.totalorder %s21, 0
      %p168 = por %p166, %p167
      %p169 = scmp.ne.s32.totalorder %s157, %s158
      %p170 = scmp.eq.s32.totalorder %s22, 1
      %p171 = por %p169, %p170
      %p173 = scmp.ne.s32.totalorder %s158, %s172
      %p174 = scmp.eq.s32.totalorder %s22, 0
      %p175 = por %p173, %p174
      %s176 = ssub.s32 %s16, %s23
      %p177 = scmp.eq.s32.totalorder %s176, 0
      %s179 = sadd.s32 %s178, 1
      %s180 = scalar_select %p177, %s178, %s179
      %p183 = pneg %p177
      %p184 = scmp.eq.s32.totalorder %s16, 1
      %p185 = por %p183, %p184
      %p186 = scmp.ne.s32.totalorder %s178, %s181
      %p187 = scmp.eq.s32.totalorder %s16, 0
      %p188 = por %p186, %p187
      %p189 = scmp.ne.s32.totalorder %s178, %s181
      %p190 = scmp.eq.s32.totalorder %s21, 1
      %p191 = por %p189, %p190
      %p192 = scmp.ne.s32.totalorder %s181, %s182
      %p193 = scmp.eq.s32.totalorder %s21, 0
      %p194 = por %p192, %p193
      %p195 = scmp.ne.s32.totalorder %s181, %s182
      %p196 = scmp.eq.s32.totalorder %s22, 1
      %p197 = por %p195, %p196
      %p199 = scmp.ne.s32.totalorder %s182, %s198
      %p200 = scmp.eq.s32.totalorder %s22, 0
      %p201 = por %p199, %p200
      %p202 = scmp.le.s32.totalorder 1, %s16
      %p203 = scmp.lt.s32.totalorder %s16, 3
      %p204 = pnand %p202, %p203
      %p205 = pneg %p204
      // Predicated region
      $region9: #{tpu_custom_call.1} parent=5 // pred_check
        _
      $region10: #{tpu_custom_call.1} parent=5 // pred_check_branch
        %207 = sbr.rel (%p204) target = $region12
      $region11: #{tpu_custom_call.1} parent=5 // pred_region
        %s208 = ssub.s32 %s16, 1
        // Predicated region
        $region13: #{tpu_custom_call.1} parent=11 // pred_check
          %p209 = pneg %p63
        $region14: #{tpu_custom_call.1} parent=11 // pred_check_branch
          %211 = sbr.rel (%p209) target = $region16
        $region15: #{tpu_custom_call.1} parent=11 // pred_region
          _
        $region16: #{tpu_custom_call.1} parent=11 // pred_fallthru
          _
        // Predicated region
        $region17: #{tpu_custom_call.1} parent=11 // pred_check
          %p212 = pneg %p84
        $region18: #{tpu_custom_call.1} parent=11 // pred_check_branch
          %214 = sbr.rel (%p212) target = $region20
        $region19: #{tpu_custom_call.1} parent=11 // pred_region
          _
        $region20: #{tpu_custom_call.1} parent=11 // pred_fallthru
          _
        // Predicated region
        $region21: #{tpu_custom_call.1} parent=11 // pred_check
          %p215 = pneg %p105
        $region22: #{tpu_custom_call.1} parent=11 // pred_check_branch
          %217 = sbr.rel (%p215) target = $region24
        $region23: #{tpu_custom_call.1} parent=11 // pred_region
          _
        $region24: #{tpu_custom_call.1} parent=11 // pred_fallthru
          _
        // Predicated region
        $region25: #{tpu_custom_call.1} parent=11 // pred_check
          %p218 = pneg %p126
        $region26: #{tpu_custom_call.1} parent=11 // pred_check_branch
          %220 = sbr.rel (%p218) target = $region28
        $region27: #{tpu_custom_call.1} parent=11 // pred_region
          _
        $region28: #{tpu_custom_call.1} parent=11 // pred_fallthru
          _
        // Predicated region
        $region29: #{tpu_custom_call.1} parent=11 // pred_check
          %p221 = pneg %p147
        $region30: #{tpu_custom_call.1} parent=11 // pred_check_branch
          %223 = sbr.rel (%p221) target = $region32
        $region31: #{tpu_custom_call.1} parent=11 // pred_region
          _
        $region32: #{tpu_custom_call.1} parent=11 // pred_fallthru
          _
        // Predicated region
        $region33: #{tpu_custom_call.1} parent=11 // pred_check
          %p224 = pneg %p168
        $region34: #{tpu_custom_call.1} parent=11 // pred_check_branch
          %226 = sbr.rel (%p224) target = $region36
        $region35: #{tpu_custom_call.1} parent=11 // pred_region
          _
        $region36: #{tpu_custom_call.1} parent=11 // pred_fallthru
          _
      $region12: #{tpu_custom_call.1} parent=5 // pred_fallthru
        _
      %p227 = scmp.lt.s32.totalorder %s16, 2
      // Predicated region
      $region37: #{tpu_custom_call.1} parent=5 // pred_check
        %p228 = pneg %p227
      $region38: #{tpu_custom_call.1} parent=5 // pred_check_branch
        %230 = sbr.rel (%p228) target = $region40
      $region39: #{tpu_custom_call.1} parent=5 // pred_region
        // Predicated region
        $region41: #{tpu_custom_call.1} parent=39 // pred_check
          %p231 = pneg %p36
        $region42: #{tpu_custom_call.1} parent=39 // pred_check_branch
          %233 = sbr.rel (%p231) target = $region44
        $region43: #{tpu_custom_call.1} parent=39 // pred_region
          %s234 = smul.u32 2, %s16
          %p235 = scmp.lt.s32.totalorder %s234, 3
          %s236 = scalar_select %p235, %s234, 3
          %s237 = smul.addr %s236, 4
          %s238 = scalar_lea.vmem %s0, %s237
          %s239 = smul.u32 2, %s16
        $region44: #{tpu_custom_call.1} parent=39 // pred_fallthru
          _
      $region40: #{tpu_custom_call.1} parent=5 // pred_fallthru
        _
      %p240 = scmp.le.s32.totalorder 1, %s16
      %p241 = scmp.lt.s32.totalorder %s16, 3
      %p242 = pnand %p240, %p241
      %p243 = pneg %p242
      // Predicated region
      $region45: #{tpu_custom_call.1} parent=5 // pred_check
        _
      $region46: #{tpu_custom_call.1} parent=5 // pred_check_branch
        %245 = sbr.rel (%p242) target = $region48
      $region47: #{tpu_custom_call.1} parent=5 // pred_region
        %s246 = ssub.s32 %s16, 1
        %s247 = smul.u32 2, %s21
        %p248 = scmp.lt.s32.totalorder %s247, 3
        %s249 = scalar_select %p248, %s247, 3
        %s250 = smul.addr %s249, 4
        %s251 = scalar_lea.vmem %s0, %s250
        %p252 = pneg %p42
        %p253 = pneg %p39
        %p254 = pneg %p63
        %p255 = pneg %p60
        %p256 = pneg %p84
        %p257 = pneg %p81
        %p258 = pneg %p105
        %p259 = pneg %p102
        %p260 = pneg %p126
        %p261 = pneg %p123
        %p262 = pneg %p147
        %p263 = pneg %p144
        %p264 = pneg %p168
        %p265 = pneg %p165
        %p266 = pneg %p194
        %p267 = pneg %p191
        %s268 = sand.u32 %s181, 1
        %s269 = scalar_lea.sflag [#allocation3], %s268
        %s270 = sand.u32 %s181, 1
        %s271 = smul.addr %s270, 16
        %s272 = scalar_lea.vmem [#allocation2], %s271
        %s273 = smul.u32 2, %s21
        %p274 = scmp.lt.s32.totalorder %s273, 3
        %s275 = scalar_select %p274, %s273, 3
        %s276 = smul.addr %s275, 4
        %s277 = scalar_lea.vmem %s0, %s276
        %s278 = smul.u32 2, %s21
        %s279 = smul.u32 2, %s21
        %v281 = vld [vmem:[%s1] sm:$0xf]
        %v282 = vld [vmem:[%s1 + $0x4] sm:$0xf]
        %v283 = vld [vmem:[%s1 + $0x8] sm:$0xf]
        %v284 = vld [vmem:[%s1 + $0xc] sm:$0xf]
        %v285 = vld [vmem:[%s1 + $0x10] sm:$0xf]
        %v286 = vld [vmem:[%s1 + $0x14] sm:$0xf]
        %v287 = vld [vmem:[%s1 + $0x18] sm:$0xf]
        %v288 = vld [vmem:[%s1 + $0x1c] sm:$0xf]
        %v289 = vld [vmem:[%s2] sm:$0xff]
        %v290 = vld [vmem:[%s2 + $0x8] sm:$0xff]
        %v291 = vld [vmem:[%s2 + $0x10] sm:$0xff]
        %v292 = vld [vmem:[%s2 + $0x18] sm:$0xff]
        %v293 = vld [vmem:[%s2 + $0x20] sm:$0xff]
        %v294 = vld [vmem:[%s2 + $0x28] sm:$0xff]
        %v295 = vld [vmem:[%s2 + $0x30] sm:$0xff]
        %v296 = vld [vmem:[%s2 + $0x38] sm:$0xff]
        %v297 = vld [vmem:[%s3] sm:$0xf]
        %v298 = vld [vmem:[%s3 + $0x4] sm:$0xf]
        %v299 = vld [vmem:[%s3 + $0x8] sm:$0xf]
        %v300 = vld [vmem:[%s3 + $0xc] sm:$0xf]
        %v301 = vld [vmem:[%s3 + $0x10] sm:$0xf]
        %v302 = vld [vmem:[%s3 + $0x14] sm:$0xf]
        %v303 = vld [vmem:[%s3 + $0x18] sm:$0xf]
        %v304 = vld [vmem:[%s3 + $0x1c] sm:$0xf]
        %v305 = vld [vmem:[%s3 + $0x20] sm:$0xf]
        %v306 = vld [vmem:[%s3 + $0x24] sm:$0xf]
        %v307 = vld [vmem:[%s3 + $0x28] sm:$0xf]
        %v308 = vld [vmem:[%s3 + $0x2c] sm:$0xf]
        %v309 = vld [vmem:[%s3 + $0x30] sm:$0xf]
        %v310 = vld [vmem:[%s3 + $0x34] sm:$0xf]
        %v311 = vld [vmem:[%s3 + $0x38] sm:$0xf]
        %v312 = vld [vmem:[%s3 + $0x3c] sm:$0xf]
        %v313 = vld [vmem:[%s4] sm:$0xff]
        %v314 = vld [vmem:[%s4 + $0x8] sm:$0xff]
        %v315 = vld [vmem:[%s4 + $0x10] sm:$0xff]
        %v316 = vld [vmem:[%s4 + $0x18] sm:$0xff]
        %v317 = vld [vmem:[%s4 + $0x20] sm:$0xff]
        %v318 = vld [vmem:[%s4 + $0x28] sm:$0xff]
        %v319 = vld [vmem:[%s4 + $0x30] sm:$0xff]
        %v320 = vld [vmem:[%s4 + $0x38] sm:$0xff]
        %v321 = vld [vmem:[%s4 + $0x40] sm:$0xff]
        %v322 = vld [vmem:[%s4 + $0x48] sm:$0xff]
        %v323 = vld [vmem:[%s4 + $0x50] sm:$0xff]
        %v324 = vld [vmem:[%s4 + $0x58] sm:$0xff]
        %v325 = vld [vmem:[%s4 + $0x60] sm:$0xff]
        %v326 = vld [vmem:[%s4 + $0x68] sm:$0xff]
        %v327 = vld [vmem:[%s4 + $0x70] sm:$0xff]
        %v328 = vld [vmem:[%s4 + $0x78] sm:$0xff]
        %v329 = vld [vmem:[%s5] sm:$0xf]
        %v330 = vld [vmem:[%s6] sm:$0xff]
        %v331 = vld [vmem:[%s277] sm:$0xf]
        %333 = vset.pattern.permute.xlu0 0
        %334 = vperm.xlu0 %333, %v289
        %v335 = vpop.permute.xlu0 %334
        %338 = vset.pattern.permute.xlu0 0
        %339 = vperm.xlu0 %338, %v290
        %v340 = vpop.permute.xlu0 %339
        %343 = vset.pattern.permute.xlu0 0
        %344 = vperm.xlu0 %343, %v291
        %v345 = vpop.permute.xlu0 %344
        %348 = vset.pattern.permute.xlu0 0
        %349 = vperm.xlu0 %348, %v292
        %v350 = vpop.permute.xlu0 %349
        %353 = vset.pattern.permute.xlu0 0
        %354 = vperm.xlu0 %353, %v293
        %v355 = vpop.permute.xlu0 %354
        %358 = vset.pattern.permute.xlu0 0
        %359 = vperm.xlu0 %358, %v294
        %v360 = vpop.permute.xlu0 %359
        %363 = vset.pattern.permute.xlu0 0
        %364 = vperm.xlu0 %363, %v295
        %v365 = vpop.permute.xlu0 %364
        %368 = vset.pattern.permute.xlu0 0
        %369 = vperm.xlu0 %368, %v296
        %v370 = vpop.permute.xlu0 %369
        %v380 = vunpack.c.l.b16 %v281
        %v381 = vunpack.c.l.b16 %v282
        %v382 = vunpack.c.l.b16 %v283
        %v383 = vunpack.c.l.b16 %v284
        %v384 = vunpack.c.l.b16 %v285
        %v385 = vunpack.c.l.b16 %v286
        %v386 = vunpack.c.l.b16 %v287
        %v387 = vunpack.c.l.b16 %v288
        %v388 = vpack.c.b16 %v381, %v380
        %v389 = vpack.c.b16 %v383, %v382
        %v390 = vpack.c.b16 %v385, %v384
        %v391 = vpack.c.b16 %v387, %v386
        %vm392 = vcmask 64512
        %v394 = vsel %vm392, %v388, 0
        %v397 = vsel %vm392, %v389, 0
        %v400 = vsel %vm392, %v390, 0
        %v403 = vsel %vm392, %v391, 0
        %vm405 = vcmask 1043456
        %v407 = vsel %vm405, %v331, 0
        %409 = vmatprep.subr.bf16.mxu0 0
        %410 = vmatpush1.bf16.msra.mxu0 %v407
        %411 = vmatprep.subr.bf16.mxu0 0
        %412 = vmatpush1.bf16.msra.mxu0 0
        %413 = vmatprep.subr.bf16.mxu0 0
        %414 = vmatpush1.bf16.msra.mxu0 0
        %415 = vmatprep.subr.bf16.mxu0 0
        %416 = vmatpush1.bf16.msra.mxu0 0
        %417 = vmatprep.subr.bf16.mxu0 0
        %418 = vmatpush1.bf16.msra.mxu0 0
        %419 = vmatprep.subr.bf16.mxu0 0
        %420 = vmatpush1.bf16.msra.mxu0 0
        %421 = vmatprep.subr.bf16.mxu0 0
        %422 = vmatpush1.bf16.msra.mxu0 0
        %423 = vmatprep.subr.bf16.mxu0 0
        %424 = vmatpush1.bf16.msra.mxu0 0
        %425 = vmatprep.subr.bf16.mxu0 0
        %426 = vmatpush1.bf16.msra.mxu0 0
        %427 = vmatprep.subr.bf16.mxu0 0
        %428 = vmatpush1.bf16.msra.mxu0 0
        %429 = vmatprep.subr.bf16.mxu0 0
        %430 = vmatpush1.bf16.msra.mxu0 0
        %431 = vmatprep.subr.bf16.mxu0 0
        %432 = vmatpush1.bf16.msra.mxu0 0
        %433 = vmatprep.subr.bf16.mxu0 0
        %434 = vmatpush1.bf16.msra.mxu0 0
        %435 = vmatprep.subr.bf16.mxu0 0
        %436 = vmatpush1.bf16.msra.mxu0 0
        %437 = vmatprep.subr.bf16.mxu0 0
        %438 = vmatpush1.bf16.msra.mxu0 0
        %439 = vmatprep.subr.bf16.mxu0 0
        %440 = vmatpush1.bf16.msra.mxu0 0
        %441 = vmatprep.mubr.bf16.mxu0 0
        %442 = vmatmul.mubr.bf16.gmra.mrb[0].mxu0 %v394
        %v443 = vpop.f32.mrb[0].mxu0
        %v444 = vadd.f32 %v335, %v443
        %v445 = vpop.f32.mrb[0].mxu0
        %v446 = vpop.f32.mrb[0].mxu0
        %v447 = vadd.f32 %v340, %v446
        %v448 = vpop.f32.mrb[0].mxu0
        %449 = vmatprep.mubr.bf16.mxu0 0
        %450 = vmatmul.mubr.bf16.gmra.mrb[0].mxu0 %v397
        %v451 = vpop.f32.mrb[0].mxu0
        %v452 = vadd.f32 %v345, %v451
        %v453 = vpop.f32.mrb[0].mxu0
        %v454 = vpop.f32.mrb[0].mxu0
        %v455 = vadd.f32 %v350, %v454
        %v456 = vpop.f32.mrb[0].mxu0
        %457 = vmatprep.mubr.bf16.mxu0 0
        %458 = vmatmul.mubr.bf16.gmra.mrb[0].mxu0 %v400
        %v459 = vpop.f32.mrb[0].mxu0
        %v460 = vadd.f32 %v355, %v459
        %v461 = vpop.f32.mrb[0].mxu0
        %v462 = vpop.f32.mrb[0].mxu0
        %v463 = vadd.f32 %v360, %v462
        %v464 = vpop.f32.mrb[0].mxu0
        %465 = vmatprep.mubr.bf16.mxu0 0
        %466 = vmatmul.mubr.bf16.gmra.mrb[0].mxu0 %v403
        %v467 = vpop.f32.mrb[0].mxu0
        %v468 = vadd.f32 %v365, %v467
        %v469 = vpop.f32.mrb[0].mxu0
        %v470 = vpop.f32.mrb[0].mxu0
        %v471 = vadd.f32 %v370, %v470
        %v472 = vpop.f32.mrb[0].mxu0
        %473 = vdwg.mxu0
        %v474 = vtanh.pop %v444
        %v475 = vtanh.pop %v447
        %v476 = vtanh.pop %v452
        %v477 = vtanh.pop %v455
        %v478 = vtanh.pop %v460
        %v479 = vtanh.pop %v463
        %v480 = vtanh.pop %v468
        %v481 = vtanh.pop %v471
        %v482 = vpack.c.bf16 %v475, %v474
        %v483 = vpack.c.bf16 %v477, %v476
        %v484 = vpack.c.bf16 %v479, %v478
        %v485 = vpack.c.bf16 %v481, %v480
        %487 = vset.pattern.permute.xlu0 0
        %488 = vperm.xlu0 %487, %v313
        %v489 = vpop.permute.xlu0 %488
        %492 = vset.pattern.permute.xlu0 0
        %493 = vperm.xlu0 %492, %v314
        %v494 = vpop.permute.xlu0 %493
        %497 = vset.pattern.permute.xlu0 0
        %498 = vperm.xlu0 %497, %v315
        %v499 = vpop.permute.xlu0 %498
        %502 = vset.pattern.permute.xlu0 0
        %503 = vperm.xlu0 %502, %v316
        %v504 = vpop.permute.xlu0 %503
        %507 = vset.pattern.permute.xlu0 0
        %508 = vperm.xlu0 %507, %v317
        %v509 = vpop.permute.xlu0 %508
        %512 = vset.pattern.permute.xlu0 0
        %513 = vperm.xlu0 %512, %v318
        %v514 = vpop.permute.xlu0 %513
        %517 = vset.pattern.permute.xlu0 0
        %518 = vperm.xlu0 %517, %v319
        %v519 = vpop.permute.xlu0 %518
        %522 = vset.pattern.permute.xlu0 0
        %523 = vperm.xlu0 %522, %v320
        %v524 = vpop.permute.xlu0 %523
        %527 = vset.pattern.permute.xlu0 0
        %528 = vperm.xlu0 %527, %v321
        %v529 = vpop.permute.xlu0 %528
        %532 = vset.pattern.permute.xlu0 0
        %533 = vperm.xlu0 %532, %v322
        %v534 = vpop.permute.xlu0 %533
        %537 = vset.pattern.permute.xlu0 0
        %538 = vperm.xlu0 %537, %v323
        %v539 = vpop.permute.xlu0 %538
        %542 = vset.pattern.permute.xlu0 0
        %543 = vperm.xlu0 %542, %v324
        %v544 = vpop.permute.xlu0 %543
        %547 = vset.pattern.permute.xlu0 0
        %548 = vperm.xlu0 %547, %v325
        %v549 = vpop.permute.xlu0 %548
        %552 = vset.pattern.permute.xlu0 0
        %553 = vperm.xlu0 %552, %v326
        %v554 = vpop.permute.xlu0 %553
        %557 = vset.pattern.permute.xlu0 0
        %558 = vperm.xlu0 %557, %v327
        %v559 = vpop.permute.xlu0 %558
        %562 = vset.pattern.permute.xlu0 0
        %563 = vperm.xlu0 %562, %v328
        %v564 = vpop.permute.xlu0 %563
        %v582 = vunpack.c.l.b16 %v297
        %v583 = vunpack.c.l.b16 %v298
        %v584 = vunpack.c.l.b16 %v299
        %v585 = vunpack.c.l.b16 %v300
        %v586 = vunpack.c.l.b16 %v301
        %v587 = vunpack.c.l.b16 %v302
        %v588 = vunpack.c.l.b16 %v303
        %v589 = vunpack.c.l.b16 %v304
        %v590 = vunpack.c.l.b16 %v305
        %v591 = vunpack.c.l.b16 %v306
        %v592 = vunpack.c.l.b16 %v307
        %v593 = vunpack.c.l.b16 %v308
        %v594 = vunpack.c.l.b16 %v309
        %v595 = vunpack.c.l.b16 %v310
        %v596 = vunpack.c.l.b16 %v311
        %v597 = vunpack.c.l.b16 %v312
        %v598 = vpack.c.b16 %v583, %v582
        %v599 = vpack.c.b16 %v585, %v584
        %v600 = vpack.c.b16 %v587, %v586
        %v601 = vpack.c.b16 %v589, %v588
        %v602 = vpack.c.b16 %v591, %v590
        %v603 = vpack.c.b16 %v593, %v592
        %v604 = vpack.c.b16 %v595, %v594
        %v605 = vpack.c.b16 %v597, %v596
        %vm606 = vcmask 523264
        %v608 = vsel %vm606, %v598, 0
        %v611 = vsel %vm606, %v599, 0
        %v614 = vsel %vm606, %v600, 0
        %v617 = vsel %vm606, %v601, 0
        %v620 = vsel %vm606, %v602, 0
        %v623 = vsel %vm606, %v603, 0
        %v626 = vsel %vm606, %v604, 0
        %v629 = vsel %vm606, %v605, 0
        %631 = vmatprep.subr.bf16.mxu0 0
        %632 = vmatpush1.bf16.msra.mxu0 %v482
        %633 = vmatprep.subr.bf16.mxu0 0
        %634 = vmatpush1.bf16.msra.mxu0 %v483
        %635 = vmatprep.subr.bf16.mxu0 0
        %636 = vmatpush1.bf16.msra.mxu0 %v484
        %637 = vmatprep.subr.bf16.mxu0 0
        %638 = vmatpush1.bf16.msra.mxu0 %v485
        %639 = vmatprep.subr.bf16.mxu0 0
        %640 = vmatpush1.bf16.msra.mxu0 0
        %641 = vmatprep.subr.bf16.mxu0 0
        %642 = vmatpush1.bf16.msra.mxu0 0
        %643 = vmatprep.subr.bf16.mxu0 0
        %644 = vmatpush1.bf16.msra.mxu0 0
        %645 = vmatprep.subr.bf16.mxu0 0
        %646 = vmatpush1.bf16.msra.mxu0 0
        %647 = vmatprep.subr.bf16.mxu0 0
        %648 = vmatpush1.bf16.msra.mxu0 0
        %649 = vmatprep.subr.bf16.mxu0 0
        %650 = vmatpush1.bf16.msra.mxu0 0
        %651 = vmatprep.subr.bf16.mxu0 0
        %652 = vmatpush1.bf16.msra.mxu0 0
        %653 = vmatprep.subr.bf16.mxu0 0
        %654 = vmatpush1.bf16.msra.mxu0 0
        %655 = vmatprep.subr.bf16.mxu0 0
        %656 = vmatpush1.bf16.msra.mxu0 0
        %657 = vmatprep.subr.bf16.mxu0 0
        %658 = vmatpush1.bf16.msra.mxu0 0
        %659 = vmatprep.subr.bf16.mxu0 0
        %660 = vmatpush1.bf16.msra.mxu0 0
        %661 = vmatprep.subr.bf16.mxu0 0
        %662 = vmatpush1.bf16.msra.mxu0 0
        %663 = vmatprep.mubr.bf16.mxu0 0
        %664 = vmatmul.mubr.bf16.gmra.mrb[0].mxu0 %v608
        %v665 = vpop.f32.mrb[0].mxu0
        %v666 = vadd.f32 %v489, %v665
        %v667 = vpop.f32.mrb[0].mxu0
        %v668 = vpop.f32.mrb[0].mxu0
        %v669 = vadd.f32 %v494, %v668
        %v670 = vpop.f32.mrb[0].mxu0
        %671 = vmatprep.mubr.bf16.mxu0 0
        %672 = vmatmul.mubr.bf16.gmra.mrb[0].mxu0 %v611
        %v673 = vpop.f32.mrb[0].mxu0
        %v674 = vadd.f32 %v499, %v673
        %v675 = vpop.f32.mrb[0].mxu0
        %v676 = vpop.f32.mrb[0].mxu0
        %v677 = vadd.f32 %v504, %v676
        %v678 = vpop.f32.mrb[0].mxu0
        %679 = vmatprep.mubr.bf16.mxu0 0
        %680 = vmatmul.mubr.bf16.gmra.mrb[0].mxu0 %v614
        %v681 = vpop.f32.mrb[0].mxu0
        %v682 = vadd.f32 %v509, %v681
        %v683 = vpop.f32.mrb[0].mxu0
        %v684 = vpop.f32.mrb[0].mxu0
        %v685 = vadd.f32 %v514, %v684
        %v686 = vpop.f32.mrb[0].mxu0
        %687 = vmatprep.mubr.bf16.mxu0 0
        %688 = vmatmul.mubr.bf16.gmra.mrb[0].mxu0 %v617
        %v689 = vpop.f32.mrb[0].mxu0
        %v690 = vadd.f32 %v519, %v689
        %v691 = vpop.f32.mrb[0].mxu0
        %v692 = vpop.f32.mrb[0].mxu0
        %v693 = vadd.f32 %v524, %v692
        %v694 = vpop.f32.mrb[0].mxu0
        %695 = vmatprep.mubr.bf16.mxu0 0
        %696 = vmatmul.mubr.bf16.gmra.mrb[0].mxu0 %v620
        %v697 = vpop.f32.mrb[0].mxu0
        %v698 = vadd.f32 %v529, %v697
        %v699 = vpop.f32.mrb[0].mxu0
        %v700 = vpop.f32.mrb[0].mxu0
        %v701 = vadd.f32 %v534, %v700
        %v702 = vpop.f32.mrb[0].mxu0
        %703 = vmatprep.mubr.bf16.mxu0 0
        %704 = vmatmul.mubr.bf16.gmra.mrb[0].mxu0 %v623
        %v705 = vpop.f32.mrb[0].mxu0
        %v706 = vadd.f32 %v539, %v705
        %v707 = vpop.f32.mrb[0].mxu0
        %v708 = vpop.f32.mrb[0].mxu0
        %v709 = vadd.f32 %v544, %v708
        %v710 = vpop.f32.mrb[0].mxu0
        %711 = vmatprep.mubr.bf16.mxu0 0
        %712 = vmatmul.mubr.bf16.gmra.mrb[0].mxu0 %v626
        %v713 = vpop.f32.mrb[0].mxu0
        %v714 = vadd.f32 %v549, %v713
        %v715 = vpop.f32.mrb[0].mxu0
        %v716 = vpop.f32.mrb[0].mxu0
        %v717 = vadd.f32 %v554, %v716
        %v718 = vpop.f32.mrb[0].mxu0
        %719 = vmatprep.mubr.bf16.mxu0 0
        %720 = vmatmul.mubr.bf16.gmra.mrb[0].mxu0 %v629
        %v721 = vpop.f32.mrb[0].mxu0
        %v722 = vadd.f32 %v559, %v721
        %v723 = vpop.f32.mrb[0].mxu0
        %v724 = vpop.f32.mrb[0].mxu0
        %v725 = vadd.f32 %v564, %v724
        %v726 = vpop.f32.mrb[0].mxu0
        %727 = vdwg.mxu0
        %v728 = vtanh.pop %v666
        %v729 = vtanh.pop %v669
        %v730 = vtanh.pop %v674
        %v731 = vtanh.pop %v677
        %v732 = vtanh.pop %v682
        %v733 = vtanh.pop %v685
        %v734 = vtanh.pop %v690
        %v735 = vtanh.pop %v693
        %v736 = vtanh.pop %v698
        %v737 = vtanh.pop %v701
        %v738 = vtanh.pop %v706
        %v739 = vtanh.pop %v709
        %v740 = vtanh.pop %v714
        %v741 = vtanh.pop %v717
        %v742 = vtanh.pop %v722
        %v743 = vtanh.pop %v725
        %v744 = vpack.c.bf16 %v729, %v728
        %v745 = vpack.c.bf16 %v731, %v730
        %v746 = vpack.c.bf16 %v733, %v732
        %v747 = vpack.c.bf16 %v735, %v734
        %v748 = vpack.c.bf16 %v737, %v736
        %v749 = vpack.c.bf16 %v739, %v738
        %v750 = vpack.c.bf16 %v741, %v740
        %v751 = vpack.c.bf16 %v743, %v742
        %753 = vset.pattern.permute.xlu0 0
        %754 = vperm.xlu0 %753, %v330
        %v755 = vpop.permute.xlu0 %754
        %757 = vmatprep.subr.bf16.mxu0 0
        %758 = vmatpush1.bf16.msra.mxu0 %v744
        %759 = vmatprep.subr.bf16.mxu0 0
        %760 = vmatpush1.bf16.msra.mxu0 %v745
        %761 = vmatprep.subr.bf16.mxu0 0
        %762 = vmatpush1.bf16.msra.mxu0 %v746
        %763 = vmatprep.subr.bf16.mxu0 0
        %764 = vmatpush1.bf16.msra.mxu0 %v747
        %765 = vmatprep.subr.bf16.mxu0 0
        %766 = vmatpush1.bf16.msra.mxu0 %v748
        %767 = vmatprep.subr.bf16.mxu0 0
        %768 = vmatpush1.bf16.msra.mxu0 %v749
        %769 = vmatprep.subr.bf16.mxu0 0
        %770 = vmatpush1.bf16.msra.mxu0 %v750
        %771 = vmatprep.subr.bf16.mxu0 0
        %772 = vmatpush1.bf16.msra.mxu0 %v751
        %773 = vmatprep.subr.bf16.mxu0 0
        %774 = vmatpush1.bf16.msra.mxu0 0
        %775 = vmatprep.subr.bf16.mxu0 0
        %776 = vmatpush1.bf16.msra.mxu0 0
        %777 = vmatprep.subr.bf16.mxu0 0
        %778 = vmatpush1.bf16.msra.mxu0 0
        %779 = vmatprep.subr.bf16.mxu0 0
        %780 = vmatpush1.bf16.msra.mxu0 0
        %781 = vmatprep.subr.bf16.mxu0 0
        %782 = vmatpush1.bf16.msra.mxu0 0
        %783 = vmatprep.subr.bf16.mxu0 0
        %784 = vmatpush1.bf16.msra.mxu0 0
        %785 = vmatprep.subr.bf16.mxu0 0
        %786 = vmatpush1.bf16.msra.mxu0 0
        %787 = vmatprep.subr.bf16.mxu0 0
        %788 = vmatpush1.bf16.msra.mxu0 0
        %789 = vmatprep.mubr.bf16.mxu0 0
        %790 = vmatmul.mubr.bf16.gmra.mrb[0].mxu0 %v329
        %v791 = vpop.f32.mrb[0].mxu0
        %v792 = vadd.f32 %v755, %v791
        %v793 = vpop.f32.mrb[0].mxu0
        %v794 = vpop.f32.mrb[0].mxu0
        %v795 = vpop.f32.mrb[0].mxu0
        %796 = vdwg.mxu0
        %797 = vst [vmem:[%s272] sm:$0xff] %v792
        %v798 = vld [vmem:[%s277 + $0x4] sm:$0xf]
        %v800 = vsel %vm405, %v798, 0
        %802 = vmatprep.subr.bf16.mxu0 0
        %803 = vmatpush1.bf16.msra.mxu0 %v800
        %804 = vmatprep.subr.bf16.mxu0 0
        %805 = vmatpush1.bf16.msra.mxu0 0
        %806 = vmatprep.subr.bf16.mxu0 0
        %807 = vmatpush1.bf16.msra.mxu0 0
        %808 = vmatprep.subr.bf16.mxu0 0
        %809 = vmatpush1.bf16.msra.mxu0 0
        %810 = vmatprep.subr.bf16.mxu0 0
        %811 = vmatpush1.bf16.msra.mxu0 0
        %812 = vmatprep.subr.bf16.mxu0 0
        %813 = vmatpush1.bf16.msra.mxu0 0
        %814 = vmatprep.subr.bf16.mxu0 0
        %815 = vmatpush1.bf16.msra.mxu0 0
        %816 = vmatprep.subr.bf16.mxu0 0
        %817 = vmatpush1.bf16.msra.mxu0 0
        %818 = vmatprep.subr.bf16.mxu0 0
        %819 = vmatpush1.bf16.msra.mxu0 0
        %820 = vmatprep.subr.bf16.mxu0 0
        %821 = vmatpush1.bf16.msra.mxu0 0
        %822 = vmatprep.subr.bf16.mxu0 0
        %823 = vmatpush1.bf16.msra.mxu0 0
        %824 = vmatprep.subr.bf16.mxu0 0
        %825 = vmatpush1.bf16.msra.mxu0 0
        %826 = vmatprep.subr.bf16.mxu0 0
        %827 = vmatpush1.bf16.msra.mxu0 0
        %828 = vmatprep.subr.bf16.mxu0 0
        %829 = vmatpush1.bf16.msra.mxu0 0
        %830 = vmatprep.subr.bf16.mxu0 0
        %831 = vmatpush1.bf16.msra.mxu0 0
        %832 = vmatprep.subr.bf16.mxu0 0
        %833 = vmatpush1.bf16.msra.mxu0 0
        %834 = vmatprep.mubr.bf16.mxu0 0
        %835 = vmatmul.mubr.bf16.gmra.mrb[0].mxu0 %v394
        %v836 = vpop.f32.mrb[0].mxu0
        %v837 = vadd.f32 %v335, %v836
        %v838 = vpop.f32.mrb[0].mxu0
        %v839 = vpop.f32.mrb[0].mxu0
        %v840 = vadd.f32 %v340, %v839
        %v841 = vpop.f32.mrb[0].mxu0
        %842 = vmatprep.mubr.bf16.mxu0 0
        %843 = vmatmul.mubr.bf16.gmra.mrb[0].mxu0 %v397
        %v844 = vpop.f32.mrb[0].mxu0
        %v845 = vadd.f32 %v345, %v844
        %v846 = vpop.f32.mrb[0].mxu0
        %v847 = vpop.f32.mrb[0].mxu0
        %v848 = vadd.f32 %v350, %v847
        %v849 = vpop.f32.mrb[0].mxu0
        %850 = vmatprep.mubr.bf16.mxu0 0
        %851 = vmatmul.mubr.bf16.gmra.mrb[0].mxu0 %v400
        %v852 = vpop.f32.mrb[0].mxu0
        %v853 = vadd.f32 %v355, %v852
        %v854 = vpop.f32.mrb[0].mxu0
        %v855 = vpop.f32.mrb[0].mxu0
        %v856 = vadd.f32 %v360, %v855
        %v857 = vpop.f32.mrb[0].mxu0
        %858 = vmatprep.mubr.bf16.mxu0 0
        %859 = vmatmul.mubr.bf16.gmra.mrb[0].mxu0 %v403
        %v860 = vpop.f32.mrb[0].mxu0
        %v861 = vadd.f32 %v365, %v860
        %v862 = vpop.f32.mrb[0].mxu0
        %v863 = vpop.f32.mrb[0].mxu0
        %v864 = vadd.f32 %v370, %v863
        %v865 = vpop.f32.mrb[0].mxu0
        %866 = vdwg.mxu0
        %v867 = vtanh.pop %v837
        %v868 = vtanh.pop %v840
        %v869 = vtanh.pop %v845
        %v870 = vtanh.pop %v848
        %v871 = vtanh.pop %v853
        %v872 = vtanh.pop %v856
        %v873 = vtanh.pop %v861
        %v874 = vtanh.pop %v864
        %v875 = vpack.c.bf16 %v868, %v867
        %v876 = vpack.c.bf16 %v870, %v869
        %v877 = vpack.c.bf16 %v872, %v871
        %v878 = vpack.c.bf16 %v874, %v873
        %879 = vmatprep.subr.bf16.mxu0 0
        %880 = vmatpush1.bf16.msra.mxu0 %v875
        %881 = vmatprep.subr.bf16.mxu0 0
        %882 = vmatpush1.bf16.msra.mxu0 %v876
        %883 = vmatprep.subr.bf16.mxu0 0
        %884 = vmatpush1.bf16.msra.mxu0 %v877
        %885 = vmatprep.subr.bf16.mxu0 0
        %886 = vmatpush1.bf16.msra.mxu0 %v878
        %887 = vmatprep.subr.bf16.mxu0 0
        %888 = vmatpush1.bf16.msra.mxu0 0
        %889 = vmatprep.subr.bf16.mxu0 0
        %890 = vmatpush1.bf16.msra.mxu0 0
        %891 = vmatprep.subr.bf16.mxu0 0
        %892 = vmatpush1.bf16.msra.mxu0 0
        %893 = vmatprep.subr.bf16.mxu0 0
        %894 = vmatpush1.bf16.msra.mxu0 0
        %895 = vmatprep.subr.bf16.mxu0 0
        %896 = vmatpush1.bf16.msra.mxu0 0
        %897 = vmatprep.subr.bf16.mxu0 0
        %898 = vmatpush1.bf16.msra.mxu0 0
        %899 = vmatprep.subr.bf16.mxu0 0
        %900 = vmatpush1.bf16.msra.mxu0 0
        %901 = vmatprep.subr.bf16.mxu0 0
        %902 = vmatpush1.bf16.msra.mxu0 0
        %903 = vmatprep.subr.bf16.mxu0 0
        %904 = vmatpush1.bf16.msra.mxu0 0
        %905 = vmatprep.subr.bf16.mxu0 0
        %906 = vmatpush1.bf16.msra.mxu0 0
        %907 = vmatprep.subr.bf16.mxu0 0
        %908 = vmatpush1.bf16.msra.mxu0 0
        %909 = vmatprep.subr.bf16.mxu0 0
        %910 = vmatpush1.bf16.msra.mxu0 0
        %911 = vmatprep.mubr.bf16.mxu0 0
        %912 = vmatmul.mubr.bf16.gmra.mrb[0].mxu0 %v608
        %v913 = vpop.f32.mrb[0].mxu0
        %v914 = vadd.f32 %v489, %v913
        %v915 = vpop.f32.mrb[0].mxu0
        %v916 = vpop.f32.mrb[0].mxu0
        %v917 = vadd.f32 %v494, %v916
        %v918 = vpop.f32.mrb[0].mxu0
        %919 = vmatprep.mubr.bf16.mxu0 0
        %920 = vmatmul.mubr.bf16.gmra.mrb[0].mxu0 %v611
        %v921 = vpop.f32.mrb[0].mxu0
        %v922 = vadd.f32 %v499, %v921
        %v923 = vpop.f32.mrb[0].mxu0
        %v924 = vpop.f32.mrb[0].mxu0
        %v925 = vadd.f32 %v504, %v924
        %v926 = vpop.f32.mrb[0].mxu0
        %927 = vmatprep.mubr.bf16.mxu0 0
        %928 = vmatmul.mubr.bf16.gmra.mrb[0].mxu0 %v614
        %v929 = vpop.f32.mrb[0].mxu0
        %v930 = vadd.f32 %v509, %v929
        %v931 = vpop.f32.mrb[0].mxu0
        %v932 = vpop.f32.mrb[0].mxu0
        %v933 = vadd.f32 %v514, %v932
        %v934 = vpop.f32.mrb[0].mxu0
        %935 = vmatprep.mubr.bf16.mxu0 0
        %936 = vmatmul.mubr.bf16.gmra.mrb[0].mxu0 %v617
        %v937 = vpop.f32.mrb[0].mxu0
        %v938 = vadd.f32 %v519, %v937
        %v939 = vpop.f32.mrb[0].mxu0
        %v940 = vpop.f32.mrb[0].mxu0
        %v941 = vadd.f32 %v524, %v940
        %v942 = vpop.f32.mrb[0].mxu0
        %943 = vmatprep.mubr.bf16.mxu0 0
        %944 = vmatmul.mubr.bf16.gmra.mrb[0].mxu0 %v620
        %v945 = vpop.f32.mrb[0].mxu0
        %v946 = vadd.f32 %v529, %v945
        %v947 = vpop.f32.mrb[0].mxu0
        %v948 = vpop.f32.mrb[0].mxu0
        %v949 = vadd.f32 %v534, %v948
        %v950 = vpop.f32.mrb[0].mxu0
        %951 = vmatprep.mubr.bf16.mxu0 0
        %952 = vmatmul.mubr.bf16.gmra.mrb[0].mxu0 %v623
        %v953 = vpop.f32.mrb[0].mxu0
        %v954 = vadd.f32 %v539, %v953
        %v955 = vpop.f32.mrb[0].mxu0
        %v956 = vpop.f32.mrb[0].mxu0
        %v957 = vadd.f32 %v544, %v956
        %v958 = vpop.f32.mrb[0].mxu0
        %959 = vmatprep.mubr.bf16.mxu0 0
        %960 = vmatmul.mubr.bf16.gmra.mrb[0].mxu0 %v626
        %v961 = vpop.f32.mrb[0].mxu0
        %v962 = vadd.f32 %v549, %v961
        %v963 = vpop.f32.mrb[0].mxu0
        %v964 = vpop.f32.mrb[0].mxu0
        %v965 = vadd.f32 %v554, %v964
        %v966 = vpop.f32.mrb[0].mxu0
        %967 = vmatprep.mubr.bf16.mxu0 0
        %968 = vmatmul.mubr.bf16.gmra.mrb[0].mxu0 %v629
        %v969 = vpop.f32.mrb[0].mxu0
        %v970 = vadd.f32 %v559, %v969
        %v971 = vpop.f32.mrb[0].mxu0
        %v972 = vpop.f32.mrb[0].mxu0
        %v973 = vadd.f32 %v564, %v972
        %v974 = vpop.f32.mrb[0].mxu0
        %975 = vdwg.mxu0
        %v976 = vtanh.pop %v914
        %v977 = vtanh.pop %v917
        %v978 = vtanh.pop %v922
        %v979 = vtanh.pop %v925
        %v980 = vtanh.pop %v930
        %v981 = vtanh.pop %v933
        %v982 = vtanh.pop %v938
        %v983 = vtanh.pop %v941
        %v984 = vtanh.pop %v946
        %v985 = vtanh.pop %v949
        %v986 = vtanh.pop %v954
        %v987 = vtanh.pop %v957
        %v988 = vtanh.pop %v962
        %v989 = vtanh.pop %v965
        %v990 = vtanh.pop %v970
        %v991 = vtanh.pop %v973
        %v992 = vpack.c.bf16 %v977, %v976
        %v993 = vpack.c.bf16 %v979, %v978
        %v994 = vpack.c.bf16 %v981, %v980
        %v995 = vpack.c.bf16 %v983, %v982
        %v996 = vpack.c.bf16 %v985, %v984
        %v997 = vpack.c.bf16 %v987, %v986
        %v998 = vpack.c.bf16 %v989, %v988
        %v999 = vpack.c.bf16 %v991, %v990
        %1000 = vmatprep.subr.bf16.mxu0 0
        %1001 = vmatpush1.bf16.msra.mxu0 %v992
        %1002 = vmatprep.subr.bf16.mxu0 0
        %1003 = vmatpush1.bf16.msra.mxu0 %v993
        %1004 = vmatprep.subr.bf16.mxu0 0
        %1005 = vmatpush1.bf16.msra.mxu0 %v994
        %1006 = vmatprep.subr.bf16.mxu0 0
        %1007 = vmatpush1.bf16.msra.mxu0 %v995
        %1008 = vmatprep.subr.bf16.mxu0 0
        %1009 = vmatpush1.bf16.msra.mxu0 %v996
        %1010 = vmatprep.subr.bf16.mxu0 0
        %1011 = vmatpush1.bf16.msra.mxu0 %v997
        %1012 = vmatprep.subr.bf16.mxu0 0
        %1013 = vmatpush1.bf16.msra.mxu0 %v998
        %1014 = vmatprep.subr.bf16.mxu0 0
        %1015 = vmatpush1.bf16.msra.mxu0 %v999
        %1016 = vmatprep.subr.bf16.mxu0 0
        %1017 = vmatpush1.bf16.msra.mxu0 0
        %1018 = vmatprep.subr.bf16.mxu0 0
        %1019 = vmatpush1.bf16.msra.mxu0 0
        %1020 = vmatprep.subr.bf16.mxu0 0
        %1021 = vmatpush1.bf16.msra.mxu0 0
        %1022 = vmatprep.subr.bf16.mxu0 0
        %1023 = vmatpush1.bf16.msra.mxu0 0
        %1024 = vmatprep.subr.bf16.mxu0 0
        %1025 = vmatpush1.bf16.msra.mxu0 0
        %1026 = vmatprep.subr.bf16.mxu0 0
        %1027 = vmatpush1.bf16.msra.mxu0 0
        %1028 = vmatprep.subr.bf16.mxu0 0
        %1029 = vmatpush1.bf16.msra.mxu0 0
        %1030 = vmatprep.subr.bf16.mxu0 0
        %1031 = vmatpush1.bf16.msra.mxu0 0
        %1032 = vmatprep.mubr.bf16.mxu0 0
        %1033 = vmatmul.mubr.bf16.gmra.mrb[0].mxu0 %v329
        %v1034 = vpop.f32.mrb[0].mxu0
        %v1035 = vadd.f32 %v755, %v1034
        %v1036 = vpop.f32.mrb[0].mxu0
        %v1037 = vpop.f32.mrb[0].mxu0
        %v1038 = vpop.f32.mrb[0].mxu0
        %1039 = vdwg.mxu0
        %1040 = vst [vmem:[%s272 + $0x8] sm:$0xff] %v1035
        %s1041 = sand.u32 %s181, 1
        %s1042 = scalar_lea.sflag [#allocation3], %s1041
        %s1043 = sand.u32 %s181, 1
        %s1044 = smul.addr %s1043, 16
        %s1045 = scalar_lea.vmem [#allocation2], %s1044
        // Predicated region
        $region49: #{tpu_custom_call.1} parent=47 // pred_check
          %p1046 = pneg %p191
        $region50: #{tpu_custom_call.1} parent=47 // pred_check_branch
          %1048 = sbr.rel (%p1046) target = $region52
        $region51: #{tpu_custom_call.1} parent=47 // pred_region
          %s1049 = smul.u32 2, %s21
          %s1051 = ssub.s32 256, 256
          %1052 = vsyncadd %s1042, %s1051
          %s1053 = smul.addr %s1049, 128
          %s1054 = scalar_lea.hbm %s7, %s1053
          %s1056 = sshll.u32 %s1045, 4
          %s1057 = int_to_ptr.vmem [resolvable:$true] %s1056
          %1059 = dma.vmem_to_hbm [thread:$0]  %s1057, 256, %s1054, %s1042
        $region52: #{tpu_custom_call.1} parent=47 // pred_fallthru
          _
      $region48: #{tpu_custom_call.1} parent=5 // pred_fallthru
        _
      %p1060 = scmp.le.s32.totalorder 2, %s16
      // Predicated region
      $region53: #{tpu_custom_call.1} parent=5 // pred_check
        %p1061 = pneg %p1060
      $region54: #{tpu_custom_call.1} parent=5 // pred_check_branch
        %1063 = sbr.rel (%p1061) target = $region56
      $region55: #{tpu_custom_call.1} parent=5 // pred_region
        %s1064 = ssub.s32 %s16, 2
        // Predicated region
        $region57: #{tpu_custom_call.1} parent=55 // pred_check
          %p1065 = pneg %p197
        $region58: #{tpu_custom_call.1} parent=55 // pred_check_branch
          %1067 = sbr.rel (%p1065) target = $region60
        $region59: #{tpu_custom_call.1} parent=55 // pred_region
          %s1068 = sand.u32 %s182, 1
          %s1069 = scalar_lea.sflag [#allocation3], %s1068
          %s1070 = sand.u32 %s182, 1
          %s1071 = smul.addr %s1070, 16
          %s1072 = scalar_lea.vmem [#allocation2], %s1071
          %1073 = dma.done %s1069, 256
        $region60: #{tpu_custom_call.1} parent=55 // pred_fallthru
          _
      $region56: #{tpu_custom_call.1} parent=5 // pred_fallthru
        _
    $region6: #{tpu_custom_call.1} parent=1 // loop_footer
      %s20 = sadd.s32 1, %s16
    $region7: #{tpu_custom_call.1} parent=1 // loop_footer_branch
      %15 = sbr.rel target = $region3
    $region8: #{tpu_custom_call.1} parent=1 // loop_exit
      _
    %1074 = vsyncpa [#allocation3], 1
    %s1075 = scalar_lea.sflag [#allocation3], 1
    %1076 = vsyncpa %s1075, 1

</llo_original>
